<compile_context>
chip_gen: v5e
topology: v5e:2x2
jax: 0.10.0
libtpu: 0.0.40
codegen_flags: <defaults>
</compile_context>

<pallas_src>
import functools

import jax
import jax.numpy as jnp
from jax.experimental import pallas as pl
from jax.experimental.pallas import tpu as pltpu

LANE = 128  # lane width / MXU-friendly feature alignment


def _round_up(n, m):
    return ((n + m - 1) // m) * m


# ----------------------------------------------------------------------------- fused kernel
def mlp_policy_kernel(x_ref, w1_ref, b1_ref, w2_ref, b2_ref,
                      w3_ref, b3_ref, w4_ref, b4_ref, o_ref):
    """Fused relu(fc1)->relu(fc2)->relu(fc3)->fc4 on one batch tile."""
    cdt = w1_ref.dtype  # matmul operand dtype (bf16 or f32); accumulate in f32

    x = x_ref[...]
    h = jnp.dot(x, w1_ref[...], preferred_element_type=jnp.float32) + b1_ref[...]
    h = jnp.maximum(h, 0.0).astype(cdt)
    h = jnp.dot(h, w2_ref[...], preferred_element_type=jnp.float32) + b2_ref[...]
    h = jnp.maximum(h, 0.0).astype(cdt)
    h = jnp.dot(h, w3_ref[...], preferred_element_type=jnp.float32) + b3_ref[...]
    h = jnp.maximum(h, 0.0).astype(cdt)
    out = jnp.dot(h, w4_ref[...], preferred_element_type=jnp.float32) + b4_ref[...]
    o_ref[...] = out.astype(o_ref.dtype)


# ----------------------------------------------------------------------------- fallback kernel (K/N tiled linear)
def _linear_kernel(x_ref, w_ref, b_ref, o_ref, acc_ref, *, apply_relu):
    @pl.when(pl.program_id(2) == 0)
    def _():
        acc_ref[...] = jnp.zeros_like(acc_ref)

    acc_ref[...] += jnp.dot(x_ref[...], w_ref[...],
                            preferred_element_type=jnp.float32)

    @pl.when(pl.program_id(2) == pl.num_programs(2) - 1)
    def _():
        r = acc_ref[...] + b_ref[...]
        if apply_relu:
            r = jnp.maximum(r, 0.0)
        o_ref[...] = r.astype(o_ref.dtype)


def _pick_tile(dim, pref, align):
    """Largest tile <= pref that divides dim and is a multiple of `align`
    (falls back to the full dim when dim isn't align-able)."""
    if dim <= pref:
        return dim
    if dim % align != 0:
        return dim
    t = (min(pref, dim) // align) * align
    while dim % t != 0:
        t -= align
    return t


def _tiled_linear(x, w, b, *, apply_relu, out_dtype, tm, vmem_limit):
    M, K = x.shape
    _, N = w.shape
    tn = _pick_tile(N, 256, LANE)
    tk = _pick_tile(K, 512, LANE)
    grid = (M // tm, N // tn, K // tk)
    return pl.pallas_call(
        functools.partial(_linear_kernel, apply_relu=apply_relu),
        out_shape=jax.ShapeDtypeStruct((M, N), out_dtype),
        grid=grid,
        in_specs=[pl.BlockSpec((tm, tk), lambda i, j, k: (i, k)),
                  pl.BlockSpec((tk, tn), lambda i, j, k: (k, j)),
                  pl.BlockSpec((1, tn), lambda i, j, k: (0, j))],
        out_specs=pl.BlockSpec((tm, tn), lambda i, j, k: (i, j)),
        scratch_shapes=[pltpu.VMEM((tm, tn), jnp.float32)],
        compiler_params=pltpu.CompilerParams(
            dimension_semantics=("parallel", "parallel", "arbitrary"),
            vmem_limit_bytes=vmem_limit),
    )(x, w, b)


def _mlp_forward_tiled(xp, prep, out_dtype, tm, vmem_limit):
    """Per-layer tiled path for hidden sizes whose weights don't fit VMEM."""
    cdt = prep["compute_dtype"]
    h = _tiled_linear(xp, prep["w1"], prep["b1"], apply_relu=True,
                      out_dtype=cdt, tm=tm, vmem_limit=vmem_limit)
    h = _tiled_linear(h, prep["w2"], prep["b2"], apply_relu=True,
                      out_dtype=cdt, tm=tm, vmem_limit=vmem_limit)
    h = _tiled_linear(h, prep["w3"], prep["b3"], apply_relu=True,
                      out_dtype=cdt, tm=tm, vmem_limit=vmem_limit)
    return _tiled_linear(h, prep["w4"], prep["b4"], apply_relu=False,
                         out_dtype=out_dtype, tm=tm, vmem_limit=vmem_limit)


# ----------------------------------------------------------------------------- param prep
def init_mlp_policy_params(key, input_size, size, output_size):
    """PyTorch-style nn.Linear init: weights (out, in), U(-1/sqrt(fan_in), 1/sqrt(fan_in))."""
    def linear(k, fan_in, fan_out):
        kw, kb = jax.random.split(k)
        bound = 1.0 / jnp.sqrt(jnp.float32(fan_in))
        w = jax.random.uniform(kw, (fan_out, fan_in), jnp.float32, -bound, bound)
        b = jax.random.uniform(kb, (fan_out,), jnp.float32, -bound, bound)
        return w, b

    k1, k2, k3, k4 = jax.random.split(key, 4)
    w1, b1 = linear(k1, input_size, size)
    w2, b2 = linear(k2, size, size)
    w3, b3 = linear(k3, size, size)
    w4, b4 = linear(k4, size, output_size)
    return {"w1": w1, "b1": b1, "w2": w2, "b2": b2,
            "w3": w3, "b3": b3, "w4": w4, "b4": b4}


def prepare_params(params, compute_dtype=jnp.bfloat16):
    """One-time prep (NOT per forward):
      * pre-transpose weights to (in, out) and cast to compute_dtype,
      * pad hidden/output feature dims to multiples of 128 (lane-dense),
      * pad the fc1 input-feature dim only to the sublane multiple (8 f32 /
        16 bf16) -- the x stream is the HBM-bound operand, don't inflate it,
      * keep biases in f32.
    Zero padding keeps the math exact: padded input features multiply zero rows,
    padded hidden features get zero weights + zero bias -> relu(0)=0."""
    sub = 16 if jnp.dtype(compute_dtype).itemsize == 2 else 8

    def prep_layer(w, b, pad_in_to):
        out_f, in_f = w.shape
        in_p = _round_up(in_f, pad_in_to)
        out_p = _round_up(out_f, LANE)
        wt = jnp.zeros((in_p, out_p), compute_dtype).at[:in_f, :out_f].set(
            w.T.astype(compute_dtype))
        br = jnp.zeros((1, out_p), jnp.float32).at[:, :out_f].set(
            b.astype(jnp.float32))
        return wt, br

    prep = {}
    prep["w1"], prep["b1"] = prep_layer(params["w1"], params["b1"], sub)
    for li in (2, 3, 4):
        prep[f"w{li}"], prep[f"b{li}"] = prep_layer(params[f"w{li}"],
                                                    params[f"b{li}"], LANE)
    prep["input_size"] = params["w1"].shape[1]
    prep["output_size"] = params["w4"].shape[0]
    prep["compute_dtype"] = compute_dtype
    return prep


# ----------------------------------------------------------------------------- hw query
def _tpu_info():
    """Return (vmem_capacity_bytes, generation_tag)."""
    cap = None
    try:
        cap = int(pltpu.get_tpu_info().vmem_capacity_bytes)
    except Exception:
        cap = None
    kind = ""
    try:
        kind = jax.devices()[0].device_kind.lower()
    except Exception:
        pass
    if "v7" in kind or "7x" in kind:
        gen = "v7x"
    elif "v6" in kind:
        gen = "v6e"
    elif "v5" in kind:
        gen = "v5e"
    else:
        gen = "other"
    if cap is None:
        cap = 64 * 2**20 if gen == "v7x" else 128 * 2**20
    return cap, gen


# ----------------------------------------------------------------------------- forward
def mlp_policy_forward(x, prep, *, tb_max=None, force_tiled=False):
    """x: (B, input_size). Returns (B, output_size) in x.dtype.

    NOTE: when compute_dtype=bf16, x is cast to bf16 before fc1 (dominant error source)."""
    cdt = prep["compute_dtype"]
    B, in_f = x.shape
    assert in_f == prep["input_size"]
    in_p = prep["w1"].shape[0]
    h_p = prep["w2"].shape[0]
    out_p = prep["w4"].shape[1]
    out_f = prep["output_size"]
    out_dtype = x.dtype

    vmem_cap, gen = _tpu_info()

    # ---- batch tile (generation aware) ----
    sub = 16 if jnp.dtype(cdt).itemsize == 2 else 8
    if tb_max is None:
        tb_max = 256 if gen in ("v6e", "v7x") else 128  # v5e MXU is 4x128^2
    tb = min(tb_max, _round_up(B, sub))
    tb = max(sub, (tb // sub) * sub)
    b_pad = _round_up(B, tb)
    if gen == "v7x" and b_pad // tb == 1 and tb > sub:
        # a single grid step would leave one of v7x's two TensorCores idle
        tb = _round_up(max(sub, (tb + 1) // 2), sub)
        b_pad = _round_up(B, tb)
    grid = (b_pad // tb,)

    # ---- wrapper glue: pad/cast x only if actually needed ----
    if b_pad != B or in_p != in_f:
        xp = jnp.pad(x.astype(cdt), ((0, b_pad - B), (0, in_p - in_f)))
    elif x.dtype != cdt:
        xp = x.astype(cdt)
    else:
        xp = x

    # ---- VMEM footprint guard (single-buffered resident weights) ----
    nbytes = lambda a: a.size * a.dtype.itemsize
    resident = sum(nbytes(prep[f"w{li}"]) + nbytes(prep[f"b{li}"])
                   for li in (1, 2, 3, 4))
    if force_tiled or resident > 0.72 * vmem_cap:
        # Resident weights won't fit (v7x's 64 MiB per TC in particular):
        # fall back to per-layer K/N-tiled matmul pipelines.
        out_padded = _mlp_forward_tiled(
            xp, prep, out_dtype, tb,
            vmem_limit=int(max(16 * 2**20, 0.85 * vmem_cap)))
        return out_padded[:B, :out_f]

    # ---- fused path: explicit VMEM budget (~90% of physical at most) ----
    io_tiles = 2 * tb * (in_p * jnp.dtype(cdt).itemsize
                         + out_p * jnp.dtype(out_dtype).itemsize)
    inter = 3 * tb * h_p * 4  # f32 layer intermediates
    vmem_limit = int(min(0.9 * vmem_cap,
                         max(16 * 2**20, 2 * resident + io_tiles + inter + (4 << 20))))

    flops = 2 * b_pad * (in_p * h_p + 2 * h_p * h_p + h_p * out_p)
    bytes_accessed = (b_pad * in_p * jnp.dtype(cdt).itemsize + resident
                      + b_pad * out_p * jnp.dtype(out_dtype).itemsize)
    cost = pl.CostEstimate(flops=flops, transcendentals=0,
                           bytes_accessed=bytes_accessed)

    def _call(weight_mode):
        w_specs = []
        for li in (1, 2, 3, 4):
            w_specs.append(pl.BlockSpec(prep[f"w{li}"].shape, lambda i: (0, 0),
                                        pipeline_mode=weight_mode))
            w_specs.append(pl.BlockSpec(prep[f"b{li}"].shape, lambda i: (0, 0),
                                        pipeline_mode=weight_mode))
        return pl.pallas_call(
            mlp_policy_kernel,
            out_shape=jax.ShapeDtypeStruct((b_pad, out_p), out_dtype),
            grid=grid,
            in_specs=[pl.BlockSpec((tb, in_p), lambda i: (i, 0))] + w_specs,
            out_specs=pl.BlockSpec((tb, out_p), lambda i: (i, 0)),
            compiler_params=pltpu.CompilerParams(
                dimension_semantics=("parallel",),
                vmem_limit_bytes=vmem_limit),
            cost_estimate=cost,
        )(xp,
          prep["w1"], prep["b1"], prep["w2"], prep["b2"],
          prep["w3"], prep["b3"], prep["w4"], prep["b4"])

    try:
        # Weights/biases never change across grid steps -> single-buffer them.
        out_padded = _call(pl.Buffered(1))
    except Exception:
        # Some builds reject Buffered(1); keep default double-buffering.
        out_padded = _call(None)

    return out_padded[:B, :out_f]


# ----------------------------------------------------------------------------- reference
def mlp_policy_ref(x, p):
    h = jax.nn.relu(x @ p["w1"].T + p["b1"])
    h = jax.nn.relu(h @ p["w2"].T + p["b2"])
    h = jax.nn.relu(h @ p["w3"].T + p["b3"])
    return h @ p["w4"].T + p["b4"]


if __name__ == "__main__":
    key = jax.random.PRNGKey(0)
    k_params, k_x1, k_x2 = jax.random.split(key, 3)

    input_size, size, output_size = 16, 32, 8
    params = init_mlp_policy_params(k_params, input_size, size, output_size)

    # --- check 1: small batch, f32 compute path (strict tolerance) ---
    batch = 8
    x = jax.random.normal(k_x1, (batch, input_size), jnp.float32)
    ref = mlp_policy_ref(x, params)
    prep_f32 = prepare_params(params, compute_dtype=jnp.float32)
    out_f32 = jax.block_until_ready(mlp_policy_forward(x, prep_f32))
    assert out_f32.shape == (batch, output_size)
    assert out_f32.dtype == x.dtype
    assert jnp.allclose(out_f32, ref, atol=1e-5, rtol=1e-5), "f32 mismatch vs reference"

    # --- check 2: larger ragged batch, bf16 weights/activations ---
    batch2 = 200
    x2 = jax.random.normal(k_x2, (batch2, input_size), jnp.float32)
    ref2 = mlp_policy_ref(x2, params)
    prep_bf16 = prepare_params(params, compute_dtype=jnp.bfloat16)
    out_bf16 = jax.block_until_ready(mlp_policy_forward(x2, prep_bf16))
    assert out_bf16.shape == (batch2, output_size)
    assert jnp.allclose(out_bf16, ref2, atol=5e-2, rtol=5e-2), "bf16 mismatch vs reference"

    # --- check 3: exercise the tiled fallback (guard path for big hidden sizes) ---
    out_tiled = jax.block_until_ready(
        mlp_policy_forward(x2, prep_f32, force_tiled=True))
    assert out_tiled.shape == (batch2, output_size)
    assert jnp.allclose(out_tiled, ref2, atol=1e-5, rtol=1e-5), "tiled-path mismatch"

    print("KERNEL_OK")
</pallas_src>

<mosaic_0001>
module attributes {stable_mosaic.version = 11 : i64} {
  func.func @mlp_policy_kernel(%arg0: i32, %arg1: memref<8x16xf32, #tpu.memory_space<vmem>>, %arg2: memref<16x128xf32, #tpu.memory_space<vmem>>, %arg3: memref<1x128xf32, #tpu.memory_space<vmem>>, %arg4: memref<128x128xf32, #tpu.memory_space<vmem>>, %arg5: memref<1x128xf32, #tpu.memory_space<vmem>>, %arg6: memref<128x128xf32, #tpu.memory_space<vmem>>, %arg7: memref<1x128xf32, #tpu.memory_space<vmem>>, %arg8: memref<128x128xf32, #tpu.memory_space<vmem>>, %arg9: memref<1x128xf32, #tpu.memory_space<vmem>>, %arg10: memref<8x128xf32, #tpu.memory_space<vmem>>) attributes {dimension_semantics = [#tpu.dimension_semantics<parallel>], iteration_bounds = array<i64: 1>, scalar_prefetch = 0 : i64, scratch_operands = 0 : i64, tpu.core_type = #tpu.core_type<tc>, window_params = [{transform_indices = @transform_0, window_bounds = array<i64: 8, 16>}, {pipeline_mode = #tpu.pipeline_mode<synchronous>, transform_indices = @transform_1, window_bounds = array<i64: 16, 128>}, {pipeline_mode = #tpu.pipeline_mode<synchronous>, transform_indices = @transform_2, window_bounds = array<i64: 1, 128>}, {pipeline_mode = #tpu.pipeline_mode<synchronous>, transform_indices = @transform_3, window_bounds = array<i64: 128, 128>}, {pipeline_mode = #tpu.pipeline_mode<synchronous>, transform_indices = @transform_4, window_bounds = array<i64: 1, 128>}, {pipeline_mode = #tpu.pipeline_mode<synchronous>, transform_indices = @transform_5, window_bounds = array<i64: 128, 128>}, {pipeline_mode = #tpu.pipeline_mode<synchronous>, transform_indices = @transform_6, window_bounds = array<i64: 1, 128>}, {pipeline_mode = #tpu.pipeline_mode<synchronous>, transform_indices = @transform_7, window_bounds = array<i64: 128, 128>}, {pipeline_mode = #tpu.pipeline_mode<synchronous>, transform_indices = @transform_8, window_bounds = array<i64: 1, 128>}, {transform_indices = @transform_9, window_bounds = array<i64: 8, 128>}]} {
    %c0 = arith.constant 0 : index
    %c0_0 = arith.constant 0 : index
    %0 = vector.load %arg1[%c0, %c0_0] : memref<8x16xf32, #tpu.memory_space<vmem>>, vector<8x16xf32>
    %c0_1 = arith.constant 0 : index
    %c0_2 = arith.constant 0 : index
    %1 = vector.load %arg2[%c0_1, %c0_2] : memref<16x128xf32, #tpu.memory_space<vmem>>, vector<16x128xf32>
    %cst = arith.constant dense<0.000000e+00> : vector<8x128xf32>
    %2 = tpu.matmul %0, %1, %cst {dimension_numbers = #tpu.dot_dimension_numbers<[1], [0], [0], [1], [0, 0, 1, 1], [], []>} : vector<8x16xf32>, vector<16x128xf32>, vector<8x128xf32> -> vector<8x128xf32>
    %c0_3 = arith.constant 0 : index
    %c0_4 = arith.constant 0 : index
    %3 = vector.load %arg3[%c0_3, %c0_4] : memref<1x128xf32, #tpu.memory_space<vmem>>, vector<1x128xf32>
    %4 = vector.broadcast %3 : vector<1x128xf32> to vector<8x128xf32>
    %5 = arith.addf %2, %4 : vector<8x128xf32>
    %cst_5 = arith.constant 0.000000e+00 : f32
    %6 = vector.broadcast %cst_5 : f32 to vector<8x128xf32>
    %7 = arith.maximumf %5, %6 : vector<8x128xf32>
    %c0_6 = arith.constant 0 : index
    %c0_7 = arith.constant 0 : index
    %8 = vector.load %arg4[%c0_6, %c0_7] : memref<128x128xf32, #tpu.memory_space<vmem>>, vector<128x128xf32>
    %cst_8 = arith.constant dense<0.000000e+00> : vector<8x128xf32>
    %9 = tpu.matmul %7, %8, %cst_8 {dimension_numbers = #tpu.dot_dimension_numbers<[1], [0], [0], [1], [0, 0, 1, 1], [], []>} : vector<8x128xf32>, vector<128x128xf32>, vector<8x128xf32> -> vector<8x128xf32>
    %c0_9 = arith.constant 0 : index
    %c0_10 = arith.constant 0 : index
    %10 = vector.load %arg5[%c0_9, %c0_10] : memref<1x128xf32, #tpu.memory_space<vmem>>, vector<1x128xf32>
    %11 = vector.broadcast %10 : vector<1x128xf32> to vector<8x128xf32>
    %12 = arith.addf %9, %11 : vector<8x128xf32>
    %cst_11 = arith.constant 0.000000e+00 : f32
    %13 = vector.broadcast %cst_11 : f32 to vector<8x128xf32>
    %14 = arith.maximumf %12, %13 : vector<8x128xf32>
    %c0_12 = arith.constant 0 : index
    %c0_13 = arith.constant 0 : index
    %15 = vector.load %arg6[%c0_12, %c0_13] : memref<128x128xf32, #tpu.memory_space<vmem>>, vector<128x128xf32>
    %cst_14 = arith.constant dense<0.000000e+00> : vector<8x128xf32>
    %16 = tpu.matmul %14, %15, %cst_14 {dimension_numbers = #tpu.dot_dimension_numbers<[1], [0], [0], [1], [0, 0, 1, 1], [], []>} : vector<8x128xf32>, vector<128x128xf32>, vector<8x128xf32> -> vector<8x128xf32>
    %c0_15 = arith.constant 0 : index
    %c0_16 = arith.constant 0 : index
    %17 = vector.load %arg7[%c0_15, %c0_16] : memref<1x128xf32, #tpu.memory_space<vmem>>, vector<1x128xf32>
    %18 = vector.broadcast %17 : vector<1x128xf32> to vector<8x128xf32>
    %19 = arith.addf %16, %18 : vector<8x128xf32>
    %cst_17 = arith.constant 0.000000e+00 : f32
    %20 = vector.broadcast %cst_17 : f32 to vector<8x128xf32>
    %21 = arith.maximumf %19, %20 : vector<8x128xf32>
    %c0_18 = arith.constant 0 : index
    %c0_19 = arith.constant 0 : index
    %22 = vector.load %arg8[%c0_18, %c0_19] : memref<128x128xf32, #tpu.memory_space<vmem>>, vector<128x128xf32>
    %cst_20 = arith.constant dense<0.000000e+00> : vector<8x128xf32>
    %23 = tpu.matmul %21, %22, %cst_20 {dimension_numbers = #tpu.dot_dimension_numbers<[1], [0], [0], [1], [0, 0, 1, 1], [], []>} : vector<8x128xf32>, vector<128x128xf32>, vector<8x128xf32> -> vector<8x128xf32>
    %c0_21 = arith.constant 0 : index
    %c0_22 = arith.constant 0 : index
    %24 = vector.load %arg9[%c0_21, %c0_22] : memref<1x128xf32, #tpu.memory_space<vmem>>, vector<1x128xf32>
    %25 = vector.broadcast %24 : vector<1x128xf32> to vector<8x128xf32>
    %26 = arith.addf %23, %25 : vector<8x128xf32>
    %c0_23 = arith.constant 0 : index
    %c0_24 = arith.constant 0 : index
    %27 = vector.load %arg10[%c0_23, %c0_24] : memref<8x128xf32, #tpu.memory_space<vmem>>, vector<8x128xf32>
    tpu.vector_store %arg10[%c0_23, %c0_24], %26 {strides = array<i32>} : memref<8x128xf32, #tpu.memory_space<vmem>>, vector<8x128xf32>,
    return
  }
  func.func @transform_0(%arg0: i32) -> (i32, i32) {
    %c0_i32 = arith.constant 0 : i32
    %c0_i32_0 = arith.constant 0 : i32
    return %arg0, %c0_i32 : i32, i32
  }
  func.func @transform_1(%arg0: i32) -> (i32, i32) {
    %c0_i32 = arith.constant 0 : i32
    %c0_i32_0 = arith.constant 0 : i32
    %c0_i32_1 = arith.constant 0 : i32
    return %c0_i32, %c0_i32_0 : i32, i32
  }
  func.func @transform_2(%arg0: i32) -> (i32, i32) {
    %c0_i32 = arith.constant 0 : i32
    %c0_i32_0 = arith.constant 0 : i32
    %c0_i32_1 = arith.constant 0 : i32
    return %c0_i32, %c0_i32_0 : i32, i32
  }
  func.func @transform_3(%arg0: i32) -> (i32, i32) {
    %c0_i32 = arith.constant 0 : i32
    %c0_i32_0 = arith.constant 0 : i32
    %c0_i32_1 = arith.constant 0 : i32
    return %c0_i32, %c0_i32_0 : i32, i32
  }
  func.func @transform_4(%arg0: i32) -> (i32, i32) {
    %c0_i32 = arith.constant 0 : i32
    %c0_i32_0 = arith.constant 0 : i32
    %c0_i32_1 = arith.constant 0 : i32
    return %c0_i32, %c0_i32_0 : i32, i32
  }
  func.func @transform_5(%arg0: i32) -> (i32, i32) {
    %c0_i32 = arith.constant 0 : i32
    %c0_i32_0 = arith.constant 0 : i32
    %c0_i32_1 = arith.constant 0 : i32
    return %c0_i32, %c0_i32_0 : i32, i32
  }
  func.func @transform_6(%arg0: i32) -> (i32, i32) {
    %c0_i32 = arith.constant 0 : i32
    %c0_i32_0 = arith.constant 0 : i32
    %c0_i32_1 = arith.constant 0 : i32
    return %c0_i32, %c0_i32_0 : i32, i32
  }
  func.func @transform_7(%arg0: i32) -> (i32, i32) {
    %c0_i32 = arith.constant 0 : i32
    %c0_i32_0 = arith.constant 0 : i32
    %c0_i32_1 = arith.constant 0 : i32
    return %c0_i32, %c0_i32_0 : i32, i32
  }
  func.func @transform_8(%arg0: i32) -> (i32, i32) {
    %c0_i32 = arith.constant 0 : i32
    %c0_i32_0 = arith.constant 0 : i32
    %c0_i32_1 = arith.constant 0 : i32
    return %c0_i32, %c0_i32_0 : i32, i32
  }
  func.func @transform_9(%arg0: i32) -> (i32, i32) {
    %c0_i32 = arith.constant 0 : i32
    %c0_i32_0 = arith.constant 0 : i32
    return %arg0, %c0_i32 : i32, i32
  }
}

module attributes {stable_mosaic.version = 11 : i64} {
  func.func @mlp_policy_kernel(%arg0: i32, %arg1: memref<8x16xf32, #tpu.memory_space<vmem>>, %arg2: memref<16x128xf32, #tpu.memory_space<vmem>>, %arg3: memref<1x128xf32, #tpu.memory_space<vmem>>, %arg4: memref<128x128xf32, #tpu.memory_space<vmem>>, %arg5: memref<1x128xf32, #tpu.memory_space<vmem>>, %arg6: memref<128x128xf32, #tpu.memory_space<vmem>>, %arg7: memref<1x128xf32, #tpu.memory_space<vmem>>, %arg8: memref<128x128xf32, #tpu.memory_space<vmem>>, %arg9: memref<1x128xf32, #tpu.memory_space<vmem>>, %arg10: memref<8x128xf32, #tpu.memory_space<vmem>>) attributes {dimension_semantics = [#tpu.dimension_semantics<parallel>], iteration_bounds = array<i64: 1>, scalar_prefetch = 0 : i64, scratch_operands = 0 : i64, tpu.core_type = #tpu.core_type<tc>, window_params = [{transform_indices = @transform_0, window_bounds = array<i64: 8, 16>}, {pipeline_mode = #tpu.pipeline_mode<synchronous>, transform_indices = @transform_1, window_bounds = array<i64: 16, 128>}, {pipeline_mode = #tpu.pipeline_mode<synchronous>, transform_indices = @transform_2, window_bounds = array<i64: 1, 128>}, {pipeline_mode = #tpu.pipeline_mode<synchronous>, transform_indices = @transform_3, window_bounds = array<i64: 128, 128>}, {pipeline_mode = #tpu.pipeline_mode<synchronous>, transform_indices = @transform_4, window_bounds = array<i64: 1, 128>}, {pipeline_mode = #tpu.pipeline_mode<synchronous>, transform_indices = @transform_5, window_bounds = array<i64: 128, 128>}, {pipeline_mode = #tpu.pipeline_mode<synchronous>, transform_indices = @transform_6, window_bounds = array<i64: 1, 128>}, {pipeline_mode = #tpu.pipeline_mode<synchronous>, transform_indices = @transform_7, window_bounds = array<i64: 128, 128>}, {pipeline_mode = #tpu.pipeline_mode<synchronous>, transform_indices = @transform_8, window_bounds = array<i64: 1, 128>}, {transform_indices = @transform_9, window_bounds = array<i64: 8, 128>}]} {
    %c0 = arith.constant 0 : index
    %c0_0 = arith.constant 0 : index
    %0 = vector.load %arg1[%c0, %c0_0] : memref<8x16xf32, #tpu.memory_space<vmem>>, vector<8x16xf32>
    %c0_1 = arith.constant 0 : index
    %c0_2 = arith.constant 0 : index
    %1 = vector.load %arg2[%c0_1, %c0_2] : memref<16x128xf32, #tpu.memory_space<vmem>>, vector<16x128xf32>
    %cst = arith.constant dense<0.000000e+00> : vector<8x128xf32>
    %2 = tpu.matmul %0, %1, %cst {dimension_numbers = #tpu.dot_dimension_numbers<[1], [0], [0], [1], [0, 0, 1, 1], [], []>} : vector<8x16xf32>, vector<16x128xf32>, vector<8x128xf32> -> vector<8x128xf32>
    %c0_3 = arith.constant 0 : index
    %c0_4 = arith.constant 0 : index
    %3 = vector.load %arg3[%c0_3, %c0_4] : memref<1x128xf32, #tpu.memory_space<vmem>>, vector<1x128xf32>
    %4 = vector.broadcast %3 : vector<1x128xf32> to vector<8x128xf32>
    %5 = arith.addf %2, %4 : vector<8x128xf32>
    %cst_5 = arith.constant 0.000000e+00 : f32
    %6 = vector.broadcast %cst_5 : f32 to vector<8x128xf32>
    %7 = arith.maximumf %5, %6 : vector<8x128xf32>
    %c0_6 = arith.constant 0 : index
    %c0_7 = arith.constant 0 : index
    %8 = vector.load %arg4[%c0_6, %c0_7] : memref<128x128xf32, #tpu.memory_space<vmem>>, vector<128x128xf32>
    %cst_8 = arith.constant dense<0.000000e+00> : vector<8x128xf32>
    %9 = tpu.matmul %7, %8, %cst_8 {dimension_numbers = #tpu.dot_dimension_numbers<[1], [0], [0], [1], [0, 0, 1, 1], [], []>} : vector<8x128xf32>, vector<128x128xf32>, vector<8x128xf32> -> vector<8x128xf32>
    %c0_9 = arith.constant 0 : index
    %c0_10 = arith.constant 0 : index
    %10 = vector.load %arg5[%c0_9, %c0_10] : memref<1x128xf32, #tpu.memory_space<vmem>>, vector<1x128xf32>
    %11 = vector.broadcast %10 : vector<1x128xf32> to vector<8x128xf32>
    %12 = arith.addf %9, %11 : vector<8x128xf32>
    %cst_11 = arith.constant 0.000000e+00 : f32
    %13 = vector.broadcast %cst_11 : f32 to vector<8x128xf32>
    %14 = arith.maximumf %12, %13 : vector<8x128xf32>
    %c0_12 = arith.constant 0 : index
    %c0_13 = arith.constant 0 : index
    %15 = vector.load %arg6[%c0_12, %c0_13] : memref<128x128xf32, #tpu.memory_space<vmem>>, vector<128x128xf32>
    %cst_14 = arith.constant dense<0.000000e+00> : vector<8x128xf32>
    %16 = tpu.matmul %14, %15, %cst_14 {dimension_numbers = #tpu.dot_dimension_numbers<[1], [0], [0], [1], [0, 0, 1, 1], [], []>} : vector<8x128xf32>, vector<128x128xf32>, vector<8x128xf32> -> vector<8x128xf32>
    %c0_15 = arith.constant 0 : index
    %c0_16 = arith.constant 0 : index
    %17 = vector.load %arg7[%c0_15, %c0_16] : memref<1x128xf32, #tpu.memory_space<vmem>>, vector<1x128xf32>
    %18 = vector.broadcast %17 : vector<1x128xf32> to vector<8x128xf32>
    %19 = arith.addf %16, %18 : vector<8x128xf32>
    %cst_17 = arith.constant 0.000000e+00 : f32
    %20 = vector.broadcast %cst_17 : f32 to vector<8x128xf32>
    %21 = arith.maximumf %19, %20 : vector<8x128xf32>
    %c0_18 = arith.constant 0 : index
    %c0_19 = arith.constant 0 : index
    %22 = vector.load %arg8[%c0_18, %c0_19] : memref<128x128xf32, #tpu.memory_space<vmem>>, vector<128x128xf32>
    %cst_20 = arith.constant dense<0.000000e+00> : vector<8x128xf32>
    %23 = tpu.matmul %21, %22, %cst_20 {dimension_numbers = #tpu.dot_dimension_numbers<[1], [0], [0], [1], [0, 0, 1, 1], [], []>} : vector<8x128xf32>, vector<128x128xf32>, vector<8x128xf32> -> vector<8x128xf32>
    %c0_21 = arith.constant 0 : index
    %c0_22 = arith.constant 0 : index
    %24 = vector.load %arg9[%c0_21, %c0_22] : memref<1x128xf32, #tpu.memory_space<vmem>>, vector<1x128xf32>
    %25 = vector.broadcast %24 : vector<1x128xf32> to vector<8x128xf32>
    %26 = arith.addf %23, %25 : vector<8x128xf32>
    %c0_23 = arith.constant 0 : index
    %c0_24 = arith.constant 0 : index
    %27 = vector.load %arg10[%c0_23, %c0_24] : memref<8x128xf32, #tpu.memory_space<vmem>>, vector<8x128xf32>
    tpu.vector_store %arg10[%c0_23, %c0_24], %26 {strides = array<i32>} : memref<8x128xf32, #tpu.memory_space<vmem>>, vector<8x128xf32>,
    return
  }
  func.func @transform_0(%arg0: i32) -> (i32, i32) {
    %c0_i32 = arith.constant 0 : i32
    %c0_i32_0 = arith.constant 0 : i32
    return %arg0, %c0_i32 : i32, i32
  }
  func.func @transform_1(%arg0: i32) -> (i32, i32) {
    %c0_i32 = arith.constant 0 : i32
    %c0_i32_0 = arith.constant 0 : i32
    %c0_i32_1 = arith.constant 0 : i32
    return %c0_i32, %c0_i32_0 : i32, i32
  }
  func.func @transform_2(%arg0: i32) -> (i32, i32) {
    %c0_i32 = arith.constant 0 : i32
    %c0_i32_0 = arith.constant 0 : i32
    %c0_i32_1 = arith.constant 0 : i32
    return %c0_i32, %c0_i32_0 : i32, i32
  }
  func.func @transform_3(%arg0: i32) -> (i32, i32) {
    %c0_i32 = arith.constant 0 : i32
    %c0_i32_0 = arith.constant 0 : i32
    %c0_i32_1 = arith.constant 0 : i32
    return %c0_i32, %c0_i32_0 : i32, i32
  }
  func.func @transform_4(%arg0: i32) -> (i32, i32) {
    %c0_i32 = arith.constant 0 : i32
    %c0_i32_0 = arith.constant 0 : i32
    %c0_i32_1 = arith.constant 0 : i32
    return %c0_i32, %c0_i32_0 : i32, i32
  }
  func.func @transform_5(%arg0: i32) -> (i32, i32) {
    %c0_i32 = arith.constant 0 : i32
    %c0_i32_0 = arith.constant 0 : i32
    %c0_i32_1 = arith.constant 0 : i32
    return %c0_i32, %c0_i32_0 : i32, i32
  }
  func.func @transform_6(%arg0: i32) -> (i32, i32) {
    %c0_i32 = arith.constant 0 : i32
    %c0_i32_0 = arith.constant 0 : i32
    %c0_i32_1 = arith.constant 0 : i32
    return %c0_i32, %c0_i32_0 : i32, i32
  }
  func.func @transform_7(%arg0: i32) -> (i32, i32) {
    %c0_i32 = arith.constant 0 : i32
    %c0_i32_0 = arith.constant 0 : i32
    %c0_i32_1 = arith.constant 0 : i32
    return %c0_i32, %c0_i32_0 : i32, i32
  }
  func.func @transform_8(%arg0: i32) -> (i32, i32) {
    %c0_i32 = arith.constant 0 : i32
    %c0_i32_0 = arith.constant 0 : i32
    %c0_i32_1 = arith.constant 0 : i32
    return %c0_i32, %c0_i32_0 : i32, i32
  }
  func.func @transform_9(%arg0: i32) -> (i32, i32) {
    %c0_i32 = arith.constant 0 : i32
    %c0_i32_0 = arith.constant 0 : i32
    return %arg0, %c0_i32 : i32, i32
  }
}

</mosaic_0001>

<llo_original>
// kernel: tpu_custom_call.1
$region0: #{tpu_custom_call.1}
  #allocation0 [shape = 'u32[]', space=smem, size = 0x4, offset = 0x4, fixed_abs, tag = 'smem constant byte address 0x4 - core index']
  #allocation1 [shape = 'u32[72,128]{1,0:T(1,128)}', space=vmem, size = 0x9000, scoped, tag = 'internal scratch']
  %s0 = inlined_call_operand.hbm [shape: f32[8,16], index: 0, kind: input, shape index: {}]
  %s1 = inlined_call_operand.hbm [shape: f32[16,128], index: 1, kind: input, shape index: {}]
  %s2 = inlined_call_operand.vmem [shape: f32[1,128], index: 2, kind: input, shape index: {}]
  %s3 = inlined_call_operand.hbm [shape: f32[128,128], index: 3, kind: input, shape index: {}]
  %s4 = inlined_call_operand.vmem [shape: f32[1,128], index: 4, kind: input, shape index: {}]
  %s5 = inlined_call_operand.hbm [shape: f32[128,128], index: 5, kind: input, shape index: {}]
  %s6 = inlined_call_operand.vmem [shape: f32[1,128], index: 6, kind: input, shape index: {}]
  %s7 = inlined_call_operand.hbm [shape: f32[128,128], index: 7, kind: input, shape index: {}]
  %s8 = inlined_call_operand.vmem [shape: f32[1,128], index: 8, kind: input, shape index: {}]
  %s9 = inlined_call_operand.hbm [shape: f32[8,128], index: 9, kind: output, shape index: {}]
  %s10 = sld [smem:[#allocation0]]
  $region66: #{tpu_custom_call.1} parent=0
    _
  %s12 = ssub.s32 1, %s10
  %s13 = scalar_select 0, %s12, %s10
  $region1: #{tpu_custom_call.1} parent=0
    #allocation2 [shape = 'u8[4096]{0}', space=vmem, size = 0x1000, scoped, tag = 'input window, operand 0, single buffered']
    #allocation3 [shape = 's32[1]{0}', space=sflag, size = 0x4, scoped, tag = 'scoped memory for tpu_custom_call.1']
    #allocation4 [shape = 's32[1]{0}', space=sflag, size = 0x4, scoped, tag = 'scoped memory for tpu_custom_call.1']
    #allocation5 [shape = 'u8[8192]{0}', space=vmem, size = 0x2000, scoped, tag = 'input window, operand 1, single buffered']
    #allocation6 [shape = 's32[1]{0}', space=sflag, size = 0x4, scoped, tag = 'scoped memory for tpu_custom_call.1']
    #allocation7 [shape = 'u8[65536]{0}', space=vmem, size = 0x10000, scoped, tag = 'input window, operand 3, single buffered']
    #allocation8 [shape = 'u8[65536]{0}', space=vmem, size = 0x10000, scoped, tag = 'input window, operand 5, single buffered']
    #allocation9 [shape = 's32[1]{0}', space=sflag, size = 0x4, scoped, tag = 'scoped memory for tpu_custom_call.1']
    #allocation10 [shape = 'u8[65536]{0}', space=vmem, size = 0x10000, scoped, tag = 'input window, operand 7, single buffered']
    #allocation11 [shape = 'u8[4096]{0}', space=vmem, size = 0x1000, scoped, tag = 'output window, operand 0, single buffered']
    %14 = vsyncpa [#allocation3], 0
    %15 = vsyncpa [#allocation6], 0
    %16 = vsyncpa [#allocation9], 0
    %17 = vsyncpa [#allocation4], 0
    // Predicated region
    $region2: #{tpu_custom_call.1} parent=1 // pred_check
      _
    $region3: #{tpu_custom_call.1} parent=1 // pred_check_branch
      %19 = sbr.rel (0) target = $region5
    $region4: #{tpu_custom_call.1} parent=1 // pred_region
      %21 = vsyncadd [#allocation3], 0
      %s23 = sshll.u32 %s0, 4
      %s24 = int_to_ptr.hbm [resolvable:$true] %s23
      %s25 = sshll.u32 [#allocation2], 4
      %s26 = int_to_ptr.vmem [resolvable:$true] %s25
      %28 = dma.hbm_to_vmem [thread:$0]  %s24, 128, %s26, [#allocation3]
    $region5: #{tpu_custom_call.1} parent=1 // pred_fallthru
      _
    // Predicated region
    $region6: #{tpu_custom_call.1} parent=1 // pred_check
      _
    $region7: #{tpu_custom_call.1} parent=1 // pred_check_branch
      %30 = sbr.rel (0) target = $region9
    $region8: #{tpu_custom_call.1} parent=1 // pred_region
      %32 = vsyncadd [#allocation6], 0
      %s33 = sshll.u32 %s1, 4
      %s34 = int_to_ptr.hbm [resolvable:$true] %s33
      %s35 = sshll.u32 [#allocation5], 4
      %s36 = int_to_ptr.vmem [resolvable:$true] %s35
      %41 = dma.hbm_to_vmem [thread:$0]  %s34, 256, %s36, [#allocation6], 128, 128, 8
    $region9: #{tpu_custom_call.1} parent=1 // pred_fallthru
      _
    // Predicated region
    $region10: #{tpu_custom_call.1} parent=1 // pred_check
      _
    $region11: #{tpu_custom_call.1} parent=1 // pred_check_branch
      %43 = sbr.rel (0) target = $region13
    $region12: #{tpu_custom_call.1} parent=1 // pred_region
      _
    $region13: #{tpu_custom_call.1} parent=1 // pred_fallthru
      _
    // Predicated region
    $region14: #{tpu_custom_call.1} parent=1 // pred_check
      _
    $region15: #{tpu_custom_call.1} parent=1 // pred_check_branch
      %45 = sbr.rel (0) target = $region17
    $region16: #{tpu_custom_call.1} parent=1 // pred_region
      %47 = vsyncadd [#allocation6], 0
      %s48 = sshll.u32 %s3, 4
      %s49 = int_to_ptr.hbm [resolvable:$true] %s48
      %s50 = sshll.u32 [#allocation7], 4
      %s51 = int_to_ptr.vmem [resolvable:$true] %s50
      %56 = dma.hbm_to_vmem [thread:$0]  %s49, 2048, %s51, [#allocation6], 128, 128, 8
    $region17: #{tpu_custom_call.1} parent=1 // pred_fallthru
      _
    // Predicated region
    $region18: #{tpu_custom_call.1} parent=1 // pred_check
      _
    $region19: #{tpu_custom_call.1} parent=1 // pred_check_branch
      %58 = sbr.rel (0) target = $region21
    $region20: #{tpu_custom_call.1} parent=1 // pred_region
      _
    $region21: #{tpu_custom_call.1} parent=1 // pred_fallthru
      _
    // Predicated region
    $region22: #{tpu_custom_call.1} parent=1 // pred_check
      _
    $region23: #{tpu_custom_call.1} parent=1 // pred_check_branch
      %60 = sbr.rel (0) target = $region25
    $region24: #{tpu_custom_call.1} parent=1 // pred_region
      %62 = vsyncadd [#allocation9], 0
      %s63 = sshll.u32 %s5, 4
      %s64 = int_to_ptr.hbm [resolvable:$true] %s63
      %s65 = sshll.u32 [#allocation8], 4
      %s66 = int_to_ptr.vmem [resolvable:$true] %s65
      %71 = dma.hbm_to_vmem [thread:$0]  %s64, 2048, %s66, [#allocation9], 128, 128, 8
    $region25: #{tpu_custom_call.1} parent=1 // pred_fallthru
      _
    // Predicated region
    $region26: #{tpu_custom_call.1} parent=1 // pred_check
      _
    $region27: #{tpu_custom_call.1} parent=1 // pred_check_branch
      %73 = sbr.rel (0) target = $region29
    $region28: #{tpu_custom_call.1} parent=1 // pred_region
      _
    $region29: #{tpu_custom_call.1} parent=1 // pred_fallthru
      _
    // Predicated region
    $region30: #{tpu_custom_call.1} parent=1 // pred_check
      _
    $region31: #{tpu_custom_call.1} parent=1 // pred_check_branch
      %75 = sbr.rel (0) target = $region33
    $region32: #{tpu_custom_call.1} parent=1 // pred_region
      %77 = vsyncadd [#allocation9], 0
      %s78 = sshll.u32 %s7, 4
      %s79 = int_to_ptr.hbm [resolvable:$true] %s78
      %s80 = sshll.u32 [#allocation10], 4
      %s81 = int_to_ptr.vmem [resolvable:$true] %s80
      %86 = dma.hbm_to_vmem [thread:$0]  %s79, 2048, %s81, [#allocation9], 128, 128, 8
    $region33: #{tpu_custom_call.1} parent=1 // pred_fallthru
      _
    // Predicated region
    $region34: #{tpu_custom_call.1} parent=1 // pred_check
      _
    $region35: #{tpu_custom_call.1} parent=1 // pred_check_branch
      %88 = sbr.rel (0) target = $region37
    $region36: #{tpu_custom_call.1} parent=1 // pred_region
      _
    $region37: #{tpu_custom_call.1} parent=1 // pred_fallthru
      _
    // Predicated region
    $region38: #{tpu_custom_call.1} parent=1 // pred_check
      _
    $region39: #{tpu_custom_call.1} parent=1 // pred_check_branch
      %90 = sbr.rel (0) target = $region41
    $region40: #{tpu_custom_call.1} parent=1 // pred_region
      %92 = dma.done [#allocation3], 128
    $region41: #{tpu_custom_call.1} parent=1 // pred_fallthru
      _
    // Predicated region
    $region42: #{tpu_custom_call.1} parent=1 // pred_check
      _
    $region43: #{tpu_custom_call.1} parent=1 // pred_check_branch
      %94 = sbr.rel (0) target = $region45
    $region44: #{tpu_custom_call.1} parent=1 // pred_region
      %96 = dma.done [#allocation6], 256
    $region45: #{tpu_custom_call.1} parent=1 // pred_fallthru
      _
    // Predicated region
    $region46: #{tpu_custom_call.1} parent=1 // pred_check
      _
    $region47: #{tpu_custom_call.1} parent=1 // pred_check_branch
      %98 = sbr.rel (0) target = $region49
    $region48: #{tpu_custom_call.1} parent=1 // pred_region
      %100 = dma.done [#allocation6], 2048
    $region49: #{tpu_custom_call.1} parent=1 // pred_fallthru
      _
    // Predicated region
    $region50: #{tpu_custom_call.1} parent=1 // pred_check
      _
    $region51: #{tpu_custom_call.1} parent=1 // pred_check_branch
      %102 = sbr.rel (0) target = $region53
    $region52: #{tpu_custom_call.1} parent=1 // pred_region
      %104 = dma.done [#allocation9], 2048
    $region53: #{tpu_custom_call.1} parent=1 // pred_fallthru
      _
    // Predicated region
    $region54: #{tpu_custom_call.1} parent=1 // pred_check
      _
    $region55: #{tpu_custom_call.1} parent=1 // pred_check_branch
      %106 = sbr.rel (0) target = $region57
    $region56: #{tpu_custom_call.1} parent=1 // pred_region
      %108 = dma.done [#allocation9], 2048
    $region57: #{tpu_custom_call.1} parent=1 // pred_fallthru
      _
    %v109 = vld [vmem:[#allocation2] sm:$0xff]
    %v110 = vld [vmem:[#allocation5] sm:$0xff]
    %v111 = vld [vmem:[#allocation5 + $0x8] sm:$0xff]
    %v112 = vld [vmem:[%s2] sm:$0x1]
    %v114 = vperm.slane %v112, 0
    %vm116 = vcmask 130048
    %v118 = vsel %vm116, %v109, 0
    %120 = vmatpush.msra.mxu0 0.0
    %121 = vmatpush.msra.mxu0 0.0
    %122 = vmatpush.msra.mxu0 0.0
    %123 = vmatpush.msra.mxu0 0.0
    %124 = vmatpush.msra.mxu0 0.0
    %125 = vmatpush.msra.mxu0 0.0
    %126 = vmatpush.msra.mxu0 0.0
    %127 = vmatpush.msra.mxu0 0.0
    %128 = vmatpush.msra.mxu0 0.0
    %129 = vmatpush.msra.mxu0 0.0
    %130 = vmatpush.msra.mxu0 0.0
    %131 = vmatpush.msra.mxu0 0.0
    %132 = vmatpush.msra.mxu0 0.0
    %133 = vmatpush.msra.mxu0 0.0
    %134 = vmatpush.msra.mxu0 %v111
    %135 = vmatpush.msra.mxu0 %v110
    %136 = vmatmul.f32.gmra.mxu0 %v118
    %v137 = vpop.f32.mrf.mxu0
    %v138 = vadd.f32 %v114, %v137
    %139 = vdwg.mxu0
    %v140 = vmax.f32 %v138, 0.0
    %v141 = vld [vmem:[#allocation7] sm:$0xff]
    %v142 = vld [vmem:[#allocation7 + $0x8] sm:$0xff]
    %v143 = vld [vmem:[#allocation7 + $0x10] sm:$0xff]
    %v144 = vld [vmem:[#allocation7 + $0x18] sm:$0xff]
    %v145 = vld [vmem:[#allocation7 + $0x20] sm:$0xff]
    %v146 = vld [vmem:[#allocation7 + $0x28] sm:$0xff]
    %v147 = vld [vmem:[#allocation7 + $0x30] sm:$0xff]
    %v148 = vld [vmem:[#allocation7 + $0x38] sm:$0xff]
    %v149 = vld [vmem:[#allocation7 + $0x40] sm:$0xff]
    %v150 = vld [vmem:[#allocation7 + $0x48] sm:$0xff]
    %v151 = vld [vmem:[#allocation7 + $0x50] sm:$0xff]
    %v152 = vld [vmem:[#allocation7 + $0x58] sm:$0xff]
    %v153 = vld [vmem:[#allocation7 + $0x60] sm:$0xff]
    %v154 = vld [vmem:[#allocation7 + $0x68] sm:$0xff]
    %v155 = vld [vmem:[#allocation7 + $0x70] sm:$0xff]
    %v156 = vld [vmem:[#allocation7 + $0x78] sm:$0xff]
    %v157 = vld [vmem:[%s4] sm:$0x1]
    %v159 = vperm.slane %v157, 0
    %161 = vmatpush.msra.mxu0 %v156
    %162 = vmatpush.msra.mxu0 %v155
    %163 = vmatpush.msra.mxu0 %v154
    %164 = vmatpush.msra.mxu0 %v153
    %165 = vmatpush.msra.mxu0 %v152
    %166 = vmatpush.msra.mxu0 %v151
    %167 = vmatpush.msra.mxu0 %v150
    %168 = vmatpush.msra.mxu0 %v149
    %169 = vmatpush.msra.mxu0 %v148
    %170 = vmatpush.msra.mxu0 %v147
    %171 = vmatpush.msra.mxu0 %v146
    %172 = vmatpush.msra.mxu0 %v145
    %173 = vmatpush.msra.mxu0 %v144
    %174 = vmatpush.msra.mxu0 %v143
    %175 = vmatpush.msra.mxu0 %v142
    %176 = vmatpush.msra.mxu0 %v141
    %177 = vmatmul.f32.gmra.mxu0 %v140
    %v178 = vpop.f32.mrf.mxu0
    %v179 = vadd.f32 %v159, %v178
    %180 = vdwg.mxu0
    %v181 = vmax.f32 %v179, 0.0
    %v182 = vld [vmem:[#allocation8] sm:$0xff]
    %v183 = vld [vmem:[#allocation8 + $0x8] sm:$0xff]
    %v184 = vld [vmem:[#allocation8 + $0x10] sm:$0xff]
    %v185 = vld [vmem:[#allocation8 + $0x18] sm:$0xff]
    %v186 = vld [vmem:[#allocation8 + $0x20] sm:$0xff]
    %v187 = vld [vmem:[#allocation8 + $0x28] sm:$0xff]
    %v188 = vld [vmem:[#allocation8 + $0x30] sm:$0xff]
    %v189 = vld [vmem:[#allocation8 + $0x38] sm:$0xff]
    %v190 = vld [vmem:[#allocation8 + $0x40] sm:$0xff]
    %v191 = vld [vmem:[#allocation8 + $0x48] sm:$0xff]
    %v192 = vld [vmem:[#allocation8 + $0x50] sm:$0xff]
    %v193 = vld [vmem:[#allocation8 + $0x58] sm:$0xff]
    %v194 = vld [vmem:[#allocation8 + $0x60] sm:$0xff]
    %v195 = vld [vmem:[#allocation8 + $0x68] sm:$0xff]
    %v196 = vld [vmem:[#allocation8 + $0x70] sm:$0xff]
    %v197 = vld [vmem:[#allocation8 + $0x78] sm:$0xff]
    %v198 = vld [vmem:[%s6] sm:$0x1]
    %v200 = vperm.slane %v198, 0
    %202 = vmatpush.msra.mxu0 %v197
    %203 = vmatpush.msra.mxu0 %v196
    %204 = vmatpush.msra.mxu0 %v195
    %205 = vmatpush.msra.mxu0 %v194
    %206 = vmatpush.msra.mxu0 %v193
    %207 = vmatpush.msra.mxu0 %v192
    %208 = vmatpush.msra.mxu0 %v191
    %209 = vmatpush.msra.mxu0 %v190
    %210 = vmatpush.msra.mxu0 %v189
    %211 = vmatpush.msra.mxu0 %v188
    %212 = vmatpush.msra.mxu0 %v187
    %213 = vmatpush.msra.mxu0 %v186
    %214 = vmatpush.msra.mxu0 %v185
    %215 = vmatpush.msra.mxu0 %v184
    %216 = vmatpush.msra.mxu0 %v183
    %217 = vmatpush.msra.mxu0 %v182
    %218 = vmatmul.f32.gmra.mxu0 %v181
    %v219 = vpop.f32.mrf.mxu0
    %v220 = vadd.f32 %v200, %v219
    %221 = vdwg.mxu0
    %v222 = vmax.f32 %v220, 0.0
    %v223 = vld [vmem:[#allocation10] sm:$0xff]
    %v224 = vld [vmem:[#allocation10 + $0x8] sm:$0xff]
    %v225 = vld [vmem:[#allocation10 + $0x10] sm:$0xff]
    %v226 = vld [vmem:[#allocation10 + $0x18] sm:$0xff]
    %v227 = vld [vmem:[#allocation10 + $0x20] sm:$0xff]
    %v228 = vld [vmem:[#allocation10 + $0x28] sm:$0xff]
    %v229 = vld [vmem:[#allocation10 + $0x30] sm:$0xff]
    %v230 = vld [vmem:[#allocation10 + $0x38] sm:$0xff]
    %v231 = vld [vmem:[#allocation10 + $0x40] sm:$0xff]
    %v232 = vld [vmem:[#allocation10 + $0x48] sm:$0xff]
    %v233 = vld [vmem:[#allocation10 + $0x50] sm:$0xff]
    %v234 = vld [vmem:[#allocation10 + $0x58] sm:$0xff]
    %v235 = vld [vmem:[#allocation10 + $0x60] sm:$0xff]
    %v236 = vld [vmem:[#allocation10 + $0x68] sm:$0xff]
    %v237 = vld [vmem:[#allocation10 + $0x70] sm:$0xff]
    %v238 = vld [vmem:[#allocation10 + $0x78] sm:$0xff]
    %v239 = vld [vmem:[%s8] sm:$0x1]
    %v241 = vperm.slane %v239, 0
    %243 = vmatpush.msra.mxu0 %v238
    %244 = vmatpush.msra.mxu0 %v237
    %245 = vmatpush.msra.mxu0 %v236
    %246 = vmatpush.msra.mxu0 %v235
    %247 = vmatpush.msra.mxu0 %v234
    %248 = vmatpush.msra.mxu0 %v233
    %249 = vmatpush.msra.mxu0 %v232
    %250 = vmatpush.msra.mxu0 %v231
    %251 = vmatpush.msra.mxu0 %v230
    %252 = vmatpush.msra.mxu0 %v229
    %253 = vmatpush.msra.mxu0 %v228
    %254 = vmatpush.msra.mxu0 %v227
    %255 = vmatpush.msra.mxu0 %v226
    %256 = vmatpush.msra.mxu0 %v225
    %257 = vmatpush.msra.mxu0 %v224
    %258 = vmatpush.msra.mxu0 %v223
    %259 = vmatmul.f32.gmra.mxu0 %v222
    %v260 = vpop.f32.mrf.mxu0
    %v261 = vadd.f32 %v241, %v260
    %262 = vdwg.mxu0
    %263 = vst [vmem:[#allocation11] sm:$0xff] %v261
    // Predicated region
    $region58: #{tpu_custom_call.1} parent=1 // pred_check
      _
    $region59: #{tpu_custom_call.1} parent=1 // pred_check_branch
      %265 = sbr.rel (0) target = $region61
    $region60: #{tpu_custom_call.1} parent=1 // pred_region
      %267 = vsyncadd [#allocation4], 0
      %s269 = sshll.u32 [#allocation11], 4
      %s270 = int_to_ptr.vmem [resolvable:$true] %s269
      %s271 = sshll.u32 %s9, 4
      %s272 = int_to_ptr.hbm [resolvable:$true] %s271
      %274 = dma.vmem_to_hbm [thread:$0]  %s270, 128, %s272, [#allocation4]
    $region61: #{tpu_custom_call.1} parent=1 // pred_fallthru
      _
    // Predicated region
    $region62: #{tpu_custom_call.1} parent=1 // pred_check
      _
    $region63: #{tpu_custom_call.1} parent=1 // pred_check_branch
      %276 = sbr.rel (0) target = $region65
    $region64: #{tpu_custom_call.1} parent=1 // pred_region
      %278 = dma.done [#allocation4], 128
    $region65: #{tpu_custom_call.1} parent=1 // pred_fallthru
      _
    %279 = vsyncpa [#allocation3], 1
    %280 = vsyncpa [#allocation6], 1
    %281 = vsyncpa [#allocation9], 1
    %282 = vsyncpa [#allocation4], 1

// kernel: tpu_custom_call.1
$region0: #{tpu_custom_call.1}
  #allocation0 [shape = 'u32[]', space=smem, size = 0x4, offset = 0x4, fixed_abs, tag = 'smem constant byte address 0x4 - core index']
  #allocation1 [shape = 'u32[72,128]{1,0:T(1,128)}', space=vmem, size = 0x9000, scoped, tag = 'internal scratch']
  %s0 = inlined_call_operand.hbm [shape: f32[8,16], index: 0, kind: input, shape index: {}]
  %s1 = inlined_call_operand.hbm [shape: f32[16,128], index: 1, kind: input, shape index: {}]
  %s2 = inlined_call_operand.vmem [shape: f32[1,128], index: 2, kind: input, shape index: {}]
  %s3 = inlined_call_operand.hbm [shape: f32[128,128], index: 3, kind: input, shape index: {}]
  %s4 = inlined_call_operand.vmem [shape: f32[1,128], index: 4, kind: input, shape index: {}]
  %s5 = inlined_call_operand.hbm [shape: f32[128,128], index: 5, kind: input, shape index: {}]
  %s6 = inlined_call_operand.vmem [shape: f32[1,128], index: 6, kind: input, shape index: {}]
  %s7 = inlined_call_operand.hbm [shape: f32[128,128], index: 7, kind: input, shape index: {}]
  %s8 = inlined_call_operand.vmem [shape: f32[1,128], index: 8, kind: input, shape index: {}]
  %s9 = inlined_call_operand.hbm [shape: f32[8,128], index: 9, kind: output, shape index: {}]
  %s10 = sld [smem:[#allocation0]]
  $region66: #{tpu_custom_call.1} parent=0
    _
  %s12 = ssub.s32 1, %s10
  %s13 = scalar_select 0, %s12, %s10
  $region1: #{tpu_custom_call.1} parent=0
    #allocation2 [shape = 'u8[4096]{0}', space=vmem, size = 0x1000, scoped, tag = 'input window, operand 0, single buffered']
    #allocation3 [shape = 's32[1]{0}', space=sflag, size = 0x4, scoped, tag = 'scoped memory for tpu_custom_call.1']
    #allocation4 [shape = 's32[1]{0}', space=sflag, size = 0x4, scoped, tag = 'scoped memory for tpu_custom_call.1']
    #allocation5 [shape = 'u8[8192]{0}', space=vmem, size = 0x2000, scoped, tag = 'input window, operand 1, single buffered']
    #allocation6 [shape = 's32[1]{0}', space=sflag, size = 0x4, scoped, tag = 'scoped memory for tpu_custom_call.1']
    #allocation7 [shape = 'u8[65536]{0}', space=vmem, size = 0x10000, scoped, tag = 'input window, operand 3, single buffered']
    #allocation8 [shape = 'u8[65536]{0}', space=vmem, size = 0x10000, scoped, tag = 'input window, operand 5, single buffered']
    #allocation9 [shape = 's32[1]{0}', space=sflag, size = 0x4, scoped, tag = 'scoped memory for tpu_custom_call.1']
    #allocation10 [shape = 'u8[65536]{0}', space=vmem, size = 0x10000, scoped, tag = 'input window, operand 7, single buffered']
    #allocation11 [shape = 'u8[4096]{0}', space=vmem, size = 0x1000, scoped, tag = 'output window, operand 0, single buffered']
    %14 = vsyncpa [#allocation3], 0
    %15 = vsyncpa [#allocation6], 0
    %16 = vsyncpa [#allocation9], 0
    %17 = vsyncpa [#allocation4], 0
    // Predicated region
    $region2: #{tpu_custom_call.1} parent=1 // pred_check
      _
    $region3: #{tpu_custom_call.1} parent=1 // pred_check_branch
      %19 = sbr.rel (0) target = $region5
    $region4: #{tpu_custom_call.1} parent=1 // pred_region
      %21 = vsyncadd [#allocation3], 0
      %s23 = sshll.u32 %s0, 4
      %s24 = int_to_ptr.hbm [resolvable:$true] %s23
      %s25 = sshll.u32 [#allocation2], 4
      %s26 = int_to_ptr.vmem [resolvable:$true] %s25
      %28 = dma.hbm_to_vmem [thread:$0]  %s24, 128, %s26, [#allocation3]
    $region5: #{tpu_custom_call.1} parent=1 // pred_fallthru
      _
    // Predicated region
    $region6: #{tpu_custom_call.1} parent=1 // pred_check
      _
    $region7: #{tpu_custom_call.1} parent=1 // pred_check_branch
      %30 = sbr.rel (0) target = $region9
    $region8: #{tpu_custom_call.1} parent=1 // pred_region
      %32 = vsyncadd [#allocation6], 0
      %s33 = sshll.u32 %s1, 4
      %s34 = int_to_ptr.hbm [resolvable:$true] %s33
      %s35 = sshll.u32 [#allocation5], 4
      %s36 = int_to_ptr.vmem [resolvable:$true] %s35
      %41 = dma.hbm_to_vmem [thread:$0]  %s34, 256, %s36, [#allocation6], 128, 128, 8
    $region9: #{tpu_custom_call.1} parent=1 // pred_fallthru
      _
    // Predicated region
    $region10: #{tpu_custom_call.1} parent=1 // pred_check
      _
    $region11: #{tpu_custom_call.1} parent=1 // pred_check_branch
      %43 = sbr.rel (0) target = $region13
    $region12: #{tpu_custom_call.1} parent=1 // pred_region
      _
    $region13: #{tpu_custom_call.1} parent=1 // pred_fallthru
      _
    // Predicated region
    $region14: #{tpu_custom_call.1} parent=1 // pred_check
      _
    $region15: #{tpu_custom_call.1} parent=1 // pred_check_branch
      %45 = sbr.rel (0) target = $region17
    $region16: #{tpu_custom_call.1} parent=1 // pred_region
      %47 = vsyncadd [#allocation6], 0
      %s48 = sshll.u32 %s3, 4
      %s49 = int_to_ptr.hbm [resolvable:$true] %s48
      %s50 = sshll.u32 [#allocation7], 4
      %s51 = int_to_ptr.vmem [resolvable:$true] %s50
      %56 = dma.hbm_to_vmem [thread:$0]  %s49, 2048, %s51, [#allocation6], 128, 128, 8
    $region17: #{tpu_custom_call.1} parent=1 // pred_fallthru
      _
    // Predicated region
    $region18: #{tpu_custom_call.1} parent=1 // pred_check
      _
    $region19: #{tpu_custom_call.1} parent=1 // pred_check_branch
      %58 = sbr.rel (0) target = $region21
    $region20: #{tpu_custom_call.1} parent=1 // pred_region
      _
    $region21: #{tpu_custom_call.1} parent=1 // pred_fallthru
      _
    // Predicated region
    $region22: #{tpu_custom_call.1} parent=1 // pred_check
      _
    $region23: #{tpu_custom_call.1} parent=1 // pred_check_branch
      %60 = sbr.rel (0) target = $region25
    $region24: #{tpu_custom_call.1} parent=1 // pred_region
      %62 = vsyncadd [#allocation9], 0
      %s63 = sshll.u32 %s5, 4
      %s64 = int_to_ptr.hbm [resolvable:$true] %s63
      %s65 = sshll.u32 [#allocation8], 4
      %s66 = int_to_ptr.vmem [resolvable:$true] %s65
      %71 = dma.hbm_to_vmem [thread:$0]  %s64, 2048, %s66, [#allocation9], 128, 128, 8
    $region25: #{tpu_custom_call.1} parent=1 // pred_fallthru
      _
    // Predicated region
    $region26: #{tpu_custom_call.1} parent=1 // pred_check
      _
    $region27: #{tpu_custom_call.1} parent=1 // pred_check_branch
      %73 = sbr.rel (0) target = $region29
    $region28: #{tpu_custom_call.1} parent=1 // pred_region
      _
    $region29: #{tpu_custom_call.1} parent=1 // pred_fallthru
      _
    // Predicated region
    $region30: #{tpu_custom_call.1} parent=1 // pred_check
      _
    $region31: #{tpu_custom_call.1} parent=1 // pred_check_branch
      %75 = sbr.rel (0) target = $region33
    $region32: #{tpu_custom_call.1} parent=1 // pred_region
      %77 = vsyncadd [#allocation9], 0
      %s78 = sshll.u32 %s7, 4
      %s79 = int_to_ptr.hbm [resolvable:$true] %s78
      %s80 = sshll.u32 [#allocation10], 4
      %s81 = int_to_ptr.vmem [resolvable:$true] %s80
      %86 = dma.hbm_to_vmem [thread:$0]  %s79, 2048, %s81, [#allocation9], 128, 128, 8
    $region33: #{tpu_custom_call.1} parent=1 // pred_fallthru
      _
    // Predicated region
    $region34: #{tpu_custom_call.1} parent=1 // pred_check
      _
    $region35: #{tpu_custom_call.1} parent=1 // pred_check_branch
      %88 = sbr.rel (0) target = $region37
    $region36: #{tpu_custom_call.1} parent=1 // pred_region
      _
    $region37: #{tpu_custom_call.1} parent=1 // pred_fallthru
      _
    // Predicated region
    $region38: #{tpu_custom_call.1} parent=1 // pred_check
      _
    $region39: #{tpu_custom_call.1} parent=1 // pred_check_branch
      %90 = sbr.rel (0) target = $region41
    $region40: #{tpu_custom_call.1} parent=1 // pred_region
      %92 = dma.done [#allocation3], 128
    $region41: #{tpu_custom_call.1} parent=1 // pred_fallthru
      _
    // Predicated region
    $region42: #{tpu_custom_call.1} parent=1 // pred_check
      _
    $region43: #{tpu_custom_call.1} parent=1 // pred_check_branch
      %94 = sbr.rel (0) target = $region45
    $region44: #{tpu_custom_call.1} parent=1 // pred_region
      %96 = dma.done [#allocation6], 256
    $region45: #{tpu_custom_call.1} parent=1 // pred_fallthru
      _
    // Predicated region
    $region46: #{tpu_custom_call.1} parent=1 // pred_check
      _
    $region47: #{tpu_custom_call.1} parent=1 // pred_check_branch
      %98 = sbr.rel (0) target = $region49
    $region48: #{tpu_custom_call.1} parent=1 // pred_region
      %100 = dma.done [#allocation6], 2048
    $region49: #{tpu_custom_call.1} parent=1 // pred_fallthru
      _
    // Predicated region
    $region50: #{tpu_custom_call.1} parent=1 // pred_check
      _
    $region51: #{tpu_custom_call.1} parent=1 // pred_check_branch
      %102 = sbr.rel (0) target = $region53
    $region52: #{tpu_custom_call.1} parent=1 // pred_region
      %104 = dma.done [#allocation9], 2048
    $region53: #{tpu_custom_call.1} parent=1 // pred_fallthru
      _
    // Predicated region
    $region54: #{tpu_custom_call.1} parent=1 // pred_check
      _
    $region55: #{tpu_custom_call.1} parent=1 // pred_check_branch
      %106 = sbr.rel (0) target = $region57
    $region56: #{tpu_custom_call.1} parent=1 // pred_region
      %108 = dma.done [#allocation9], 2048
    $region57: #{tpu_custom_call.1} parent=1 // pred_fallthru
      _
    %v109 = vld [vmem:[#allocation2] sm:$0xff]
    %v110 = vld [vmem:[#allocation5] sm:$0xff]
    %v111 = vld [vmem:[#allocation5 + $0x8] sm:$0xff]
    %v112 = vld [vmem:[%s2] sm:$0x1]
    %v114 = vperm.slane %v112, 0
    %vm116 = vcmask 130048
    %v118 = vsel %vm116, %v109, 0
    %120 = vmatpush.msra.mxu0 0.0
    %121 = vmatpush.msra.mxu0 0.0
    %122 = vmatpush.msra.mxu0 0.0
    %123 = vmatpush.msra.mxu0 0.0
    %124 = vmatpush.msra.mxu0 0.0
    %125 = vmatpush.msra.mxu0 0.0
    %126 = vmatpush.msra.mxu0 0.0
    %127 = vmatpush.msra.mxu0 0.0
    %128 = vmatpush.msra.mxu0 0.0
    %129 = vmatpush.msra.mxu0 0.0
    %130 = vmatpush.msra.mxu0 0.0
    %131 = vmatpush.msra.mxu0 0.0
    %132 = vmatpush.msra.mxu0 0.0
    %133 = vmatpush.msra.mxu0 0.0
    %134 = vmatpush.msra.mxu0 %v111
    %135 = vmatpush.msra.mxu0 %v110
    %136 = vmatmul.f32.gmra.mxu0 %v118
    %v137 = vpop.f32.mrf.mxu0
    %v138 = vadd.f32 %v114, %v137
    %139 = vdwg.mxu0
    %v140 = vmax.f32 %v138, 0.0
    %v141 = vld [vmem:[#allocation7] sm:$0xff]
    %v142 = vld [vmem:[#allocation7 + $0x8] sm:$0xff]
    %v143 = vld [vmem:[#allocation7 + $0x10] sm:$0xff]
    %v144 = vld [vmem:[#allocation7 + $0x18] sm:$0xff]
    %v145 = vld [vmem:[#allocation7 + $0x20] sm:$0xff]
    %v146 = vld [vmem:[#allocation7 + $0x28] sm:$0xff]
    %v147 = vld [vmem:[#allocation7 + $0x30] sm:$0xff]
    %v148 = vld [vmem:[#allocation7 + $0x38] sm:$0xff]
    %v149 = vld [vmem:[#allocation7 + $0x40] sm:$0xff]
    %v150 = vld [vmem:[#allocation7 + $0x48] sm:$0xff]
    %v151 = vld [vmem:[#allocation7 + $0x50] sm:$0xff]
    %v152 = vld [vmem:[#allocation7 + $0x58] sm:$0xff]
    %v153 = vld [vmem:[#allocation7 + $0x60] sm:$0xff]
    %v154 = vld [vmem:[#allocation7 + $0x68] sm:$0xff]
    %v155 = vld [vmem:[#allocation7 + $0x70] sm:$0xff]
    %v156 = vld [vmem:[#allocation7 + $0x78] sm:$0xff]
    %v157 = vld [vmem:[%s4] sm:$0x1]
    %v159 = vperm.slane %v157, 0
    %161 = vmatpush.msra.mxu0 %v156
    %162 = vmatpush.msra.mxu0 %v155
    %163 = vmatpush.msra.mxu0 %v154
    %164 = vmatpush.msra.mxu0 %v153
    %165 = vmatpush.msra.mxu0 %v152
    %166 = vmatpush.msra.mxu0 %v151
    %167 = vmatpush.msra.mxu0 %v150
    %168 = vmatpush.msra.mxu0 %v149
    %169 = vmatpush.msra.mxu0 %v148
    %170 = vmatpush.msra.mxu0 %v147
    %171 = vmatpush.msra.mxu0 %v146
    %172 = vmatpush.msra.mxu0 %v145
    %173 = vmatpush.msra.mxu0 %v144
    %174 = vmatpush.msra.mxu0 %v143
    %175 = vmatpush.msra.mxu0 %v142
    %176 = vmatpush.msra.mxu0 %v141
    %177 = vmatmul.f32.gmra.mxu0 %v140
    %v178 = vpop.f32.mrf.mxu0
    %v179 = vadd.f32 %v159, %v178
    %180 = vdwg.mxu0
    %v181 = vmax.f32 %v179, 0.0
    %v182 = vld [vmem:[#allocation8] sm:$0xff]
    %v183 = vld [vmem:[#allocation8 + $0x8] sm:$0xff]
    %v184 = vld [vmem:[#allocation8 + $0x10] sm:$0xff]
    %v185 = vld [vmem:[#allocation8 + $0x18] sm:$0xff]
    %v186 = vld [vmem:[#allocation8 + $0x20] sm:$0xff]
    %v187 = vld [vmem:[#allocation8 + $0x28] sm:$0xff]
    %v188 = vld [vmem:[#allocation8 + $0x30] sm:$0xff]
    %v189 = vld [vmem:[#allocation8 + $0x38] sm:$0xff]
    %v190 = vld [vmem:[#allocation8 + $0x40] sm:$0xff]
    %v191 = vld [vmem:[#allocation8 + $0x48] sm:$0xff]
    %v192 = vld [vmem:[#allocation8 + $0x50] sm:$0xff]
    %v193 = vld [vmem:[#allocation8 + $0x58] sm:$0xff]
    %v194 = vld [vmem:[#allocation8 + $0x60] sm:$0xff]
    %v195 = vld [vmem:[#allocation8 + $0x68] sm:$0xff]
    %v196 = vld [vmem:[#allocation8 + $0x70] sm:$0xff]
    %v197 = vld [vmem:[#allocation8 + $0x78] sm:$0xff]
    %v198 = vld [vmem:[%s6] sm:$0x1]
    %v200 = vperm.slane %v198, 0
    %202 = vmatpush.msra.mxu0 %v197
    %203 = vmatpush.msra.mxu0 %v196
    %204 = vmatpush.msra.mxu0 %v195
    %205 = vmatpush.msra.mxu0 %v194
    %206 = vmatpush.msra.mxu0 %v193
    %207 = vmatpush.msra.mxu0 %v192
    %208 = vmatpush.msra.mxu0 %v191
    %209 = vmatpush.msra.mxu0 %v190
    %210 = vmatpush.msra.mxu0 %v189
    %211 = vmatpush.msra.mxu0 %v188
    %212 = vmatpush.msra.mxu0 %v187
    %213 = vmatpush.msra.mxu0 %v186
    %214 = vmatpush.msra.mxu0 %v185
    %215 = vmatpush.msra.mxu0 %v184
    %216 = vmatpush.msra.mxu0 %v183
    %217 = vmatpush.msra.mxu0 %v182
    %218 = vmatmul.f32.gmra.mxu0 %v181
    %v219 = vpop.f32.mrf.mxu0
    %v220 = vadd.f32 %v200, %v219
    %221 = vdwg.mxu0
    %v222 = vmax.f32 %v220, 0.0
    %v223 = vld [vmem:[#allocation10] sm:$0xff]
    %v224 = vld [vmem:[#allocation10 + $0x8] sm:$0xff]
    %v225 = vld [vmem:[#allocation10 + $0x10] sm:$0xff]
    %v226 = vld [vmem:[#allocation10 + $0x18] sm:$0xff]
    %v227 = vld [vmem:[#allocation10 + $0x20] sm:$0xff]
    %v228 = vld [vmem:[#allocation10 + $0x28] sm:$0xff]
    %v229 = vld [vmem:[#allocation10 + $0x30] sm:$0xff]
    %v230 = vld [vmem:[#allocation10 + $0x38] sm:$0xff]
    %v231 = vld [vmem:[#allocation10 + $0x40] sm:$0xff]
    %v232 = vld [vmem:[#allocation10 + $0x48] sm:$0xff]
    %v233 = vld [vmem:[#allocation10 + $0x50] sm:$0xff]
    %v234 = vld [vmem:[#allocation10 + $0x58] sm:$0xff]
    %v235 = vld [vmem:[#allocation10 + $0x60] sm:$0xff]
    %v236 = vld [vmem:[#allocation10 + $0x68] sm:$0xff]
    %v237 = vld [vmem:[#allocation10 + $0x70] sm:$0xff]
    %v238 = vld [vmem:[#allocation10 + $0x78] sm:$0xff]
    %v239 = vld [vmem:[%s8] sm:$0x1]
    %v241 = vperm.slane %v239, 0
    %243 = vmatpush.msra.mxu0 %v238
    %244 = vmatpush.msra.mxu0 %v237
    %245 = vmatpush.msra.mxu0 %v236
    %246 = vmatpush.msra.mxu0 %v235
    %247 = vmatpush.msra.mxu0 %v234
    %248 = vmatpush.msra.mxu0 %v233
    %249 = vmatpush.msra.mxu0 %v232
    %250 = vmatpush.msra.mxu0 %v231
    %251 = vmatpush.msra.mxu0 %v230
    %252 = vmatpush.msra.mxu0 %v229
    %253 = vmatpush.msra.mxu0 %v228
    %254 = vmatpush.msra.mxu0 %v227
    %255 = vmatpush.msra.mxu0 %v226
    %256 = vmatpush.msra.mxu0 %v225
    %257 = vmatpush.msra.mxu0 %v224
    %258 = vmatpush.msra.mxu0 %v223
    %259 = vmatmul.f32.gmra.mxu0 %v222
    %v260 = vpop.f32.mrf.mxu0
    %v261 = vadd.f32 %v241, %v260
    %262 = vdwg.mxu0
    %263 = vst [vmem:[#allocation11] sm:$0xff] %v261
    // Predicated region
    $region58: #{tpu_custom_call.1} parent=1 // pred_check
      _
    $region59: #{tpu_custom_call.1} parent=1 // pred_check_branch
      %265 = sbr.rel (0) target = $region61
    $region60: #{tpu_custom_call.1} parent=1 // pred_region
      %267 = vsyncadd [#allocation4], 0
      %s269 = sshll.u32 [#allocation11], 4
      %s270 = int_to_ptr.vmem [resolvable:$true] %s269
      %s271 = sshll.u32 %s9, 4
      %s272 = int_to_ptr.hbm [resolvable:$true] %s271
      %274 = dma.vmem_to_hbm [thread:$0]  %s270, 128, %s272, [#allocation4]
    $region61: #{tpu_custom_call.1} parent=1 // pred_fallthru
      _
    // Predicated region
    $region62: #{tpu_custom_call.1} parent=1 // pred_check
      _
    $region63: #{tpu_custom_call.1} parent=1 // pred_check_branch
      %276 = sbr.rel (0) target = $region65
    $region64: #{tpu_custom_call.1} parent=1 // pred_region
      %278 = dma.done [#allocation4], 128
    $region65: #{tpu_custom_call.1} parent=1 // pred_fallthru
      _
    %279 = vsyncpa [#allocation3], 1
    %280 = vsyncpa [#allocation6], 1
    %281 = vsyncpa [#allocation9], 1
    %282 = vsyncpa [#allocation4], 1

</llo_original>
